<compile_context>
chip_gen: v6e
topology: v6e:2x2x1
jax: 0.10.0
libtpu: 0.0.40
codegen_flags: <defaults>
</compile_context>

<pallas_src>
import jax
import jax.numpy as jnp
import numpy as np
from jax import lax
from jax.experimental import pallas as pl
from jax.experimental.pallas import tpu as pltpu


def _mask_mean_kernel(yhat_ref, y_ref, out_ref):
    # yhat_ref: (TB, C, H, W) logits (native dtype) | y_ref: (TB, H, W) int32
    # out_ref:  (1, 1, 1) f32 -- sum of the TB per-image scores of this block.
    TB, C, H, W = yhat_ref.shape
    f32 = jnp.float32
    bf16 = jnp.bfloat16

    # 3x3 banded ("tridiagonal") matrices, generated in-kernel (no HBM inputs).
    ih = lax.broadcasted_iota(jnp.int32, (H, H), 0)
    jh = lax.broadcasted_iota(jnp.int32, (H, H), 1)
    band_h = (jnp.abs(ih - jh) <= 1).astype(bf16)            # (H, H)
    iw = lax.broadcasted_iota(jnp.int32, (W, W), 0)
    jw = lax.broadcasted_iota(jnp.int32, (W, W), 1)
    band_w = (jnp.abs(iw - jw) <= 1).astype(bf16)            # (W, W)

    # Number of in-bounds 3x3 neighbours per pixel (separable, analytic).
    ri = lax.broadcasted_iota(jnp.int32, (H, W), 0)
    ci = lax.broadcasted_iota(jnp.int32, (H, W), 1)
    cnt_h = 3.0 - (ri == 0).astype(f32) - (ri == H - 1).astype(f32)
    cnt_w = 3.0 - (ci == 0).astype(f32) - (ci == W - 1).astype(f32)
    nbr = cnt_h * cnt_w                                       # (H, W)

    area = f32(H * W)

    def box3(mask_bf16):
        # Sum over the in-bounds 3x3 neighbourhood (zero padding), separable:
        # two tiny bf16 MXU matmuls; results <= 9 so exact.
        t = jnp.dot(mask_bf16, band_w, preferred_element_type=f32).astype(bf16)
        return jnp.dot(band_h, t, preferred_element_type=f32)  # (H, W) f32

    def cnt(mask_bool):
        return jnp.sum(mask_bool.astype(f32), keepdims=True)   # (1, 1)

    total = jnp.zeros((1, 1), f32)

    for b in range(TB):  # static unroll over the images of this block
        xb = yhat_ref[b]                                        # (C, H, W)
        # argmax over channels (softmax is monotone -> argmax of logits).
        xmax = jnp.max(xb, axis=0, keepdims=True)               # (1, H, W)
        cidx = lax.broadcasted_iota(jnp.int32, (C, H, W), 0).astype(f32)
        pred = jnp.min(jnp.where(xb == xmax, cidx, f32(C)), axis=0)  # (H, W)

        yb = y_ref[b]                                           # (H, W) int32
        gt_r = (yb == 1).astype(bf16)    # "red"   GT mask (class 1)
        gt_g = (yb == 2).astype(bf16)    # "green" GT mask (class 2)

        sr = box3(gt_r)
        sg = box3(gt_g)
        dil_r = sr > 0.5                 # cv2.dilate: OOB ignored (pad min)
        dil_g = sg > 0.5
        ero_r = sr > nbr - 0.5           # cv2.erode:  OOB ignored (pad max)
        ero_g = sg > nbr - 0.5

        p1 = pred == 1.0
        p2 = pred == 2.0

        # false positives: predicted colored where dilated GT is black
        fp = cnt(jnp.logical_and(jnp.logical_not(dil_r), p1)) + \
             cnt(jnp.logical_and(jnp.logical_not(dil_g), p2))
        # false negatives: eroded GT colored where prediction is black
        fn = cnt(jnp.logical_and(ero_r, jnp.logical_not(p1))) + \
             cnt(jnp.logical_and(ero_g, jnp.logical_not(p2)))
        predcnt = cnt(p1) + cnt(p2)

        tp = predcnt - fp
        tn = area - (fp + fn + tp)

        sensitivity = tp / (tp + fn)     # may be NaN, matching the PyTorch spec
        specificity = tn / (tn + fp)
        total = total + 0.5 * (sensitivity + specificity)

    out_ref[0] = total


def _pick_batch_tile(B, max_tb=8):
    # Largest divisor of B that is <= max_tb (keeps every block full; padded
    # batches would otherwise need in-kernel masking of dummy images).
    for tb in range(min(B, max_tb), 0, -1):
        if B % tb == 0:
            return tb
    return 1


@jax.jit
def mask_mean_metric(yhat, y):
    """Pallas equivalent of MaskMeanMetric.forward (returns scalar f32)."""
    B, C, H, W = yhat.shape
    y = y.astype(jnp.int32)            # labels as int32; logits stay native dtype

    TB = _pick_batch_tile(B)
    G = B // TB

    block_sums = pl.pallas_call(
        _mask_mean_kernel,
        out_shape=jax.ShapeDtypeStruct((G, 1, 1), jnp.float32),
        grid=(G,),
        in_specs=[
            pl.BlockSpec((TB, C, H, W), lambda g: (g, 0, 0, 0)),
            pl.BlockSpec((TB, H, W), lambda g: (g, 0, 0)),
        ],
        out_specs=pl.BlockSpec((1, 1, 1), lambda g: (g, 0, 0)),
        compiler_params=pltpu.CompilerParams(
            dimension_semantics=("parallel",)),
    )(yhat, y)

    return jnp.sum(block_sums) / B     # score.mean() over the batch


def _reference_metric(yhat, y):
    """Plain numpy reference mirroring the PyTorch/cv2 semantics."""
    yhat = np.asarray(yhat, np.float32)
    y = np.asarray(y)
    B, C, H, W = yhat.shape
    pred = np.argmax(yhat, axis=1)
    gt_r = (y == 1)
    gt_g = (y == 2)

    def morph(m, is_erode):
        fill = bool(is_erode)
        p = np.pad(m, ((0, 0), (1, 1), (1, 1)), constant_values=fill)
        stack = np.stack([p[:, dy:dy + H, dx:dx + W]
                          for dy in range(3) for dx in range(3)], 0)
        return stack.all(0) if is_erode else stack.any(0)

    dil_r, dil_g = morph(gt_r, False), morph(gt_g, False)
    ero_r, ero_g = morph(gt_r, True), morph(gt_g, True)
    p1, p2 = (pred == 1), (pred == 2)
    ax = (1, 2)
    fp = (np.logical_and(~dil_r, p1).sum(ax) +
          np.logical_and(~dil_g, p2).sum(ax)).astype(np.float64)
    fn = (np.logical_and(ero_r, ~p1).sum(ax) +
          np.logical_and(ero_g, ~p2).sum(ax)).astype(np.float64)
    predcnt = (p1.sum(ax) + p2.sum(ax)).astype(np.float64)
    tp = predcnt - fp
    tn = H * W - (fp + fn + tp)
    sens = tp / (tp + fn)
    spec = tn / (tn + fp)
    return float(((sens + spec) / 2.0).mean())


if __name__ == "__main__":
    B, C, H, W = 2, 3, 16, 16   # in_channels=3 default
    key = jax.random.PRNGKey(0)
    k1, k2 = jax.random.split(key)
    yhat = jax.random.normal(k1, (B, C, H, W), dtype=jnp.float32)
    y = jax.random.randint(k2, (B, H, W), 0, 3, dtype=jnp.int32)

    score = mask_mean_metric(yhat, y)
    jax.block_until_ready(score)

    ref = _reference_metric(np.asarray(yhat), np.asarray(y))
    assert abs(float(score) - ref) < 1e-5, (float(score), ref)
    print("KERNEL_OK")
</pallas_src>

<mosaic_0001>
module attributes {stable_mosaic.version = 11 : i64} {
  func.func @_mask_mean_kernel(%arg0: i32, %arg1: memref<2x3x16x16xf32, #tpu.memory_space<vmem>>, %arg2: memref<2x16x16xi32, #tpu.memory_space<vmem>>, %arg3: memref<1x1x1xf32, #tpu.memory_space<vmem>>) attributes {dimension_semantics = [#tpu.dimension_semantics<parallel>], iteration_bounds = array<i64: 1>, scalar_prefetch = 0 : i64, scratch_operands = 0 : i64, tpu.core_type = #tpu.core_type<tc>, window_params = [{transform_indices = @transform_0, window_bounds = array<i64: 2, 3, 16, 16>}, {transform_indices = @transform_1, window_bounds = array<i64: 2, 16, 16>}, {transform_indices = @transform_2, window_bounds = array<i64: 1, 1, 1>}]} {
    %0 = tpu.iota {dimensions = array<i32: 0>} : vector<16x16xi32>
    %1 = tpu.iota {dimensions = array<i32: 1>} : vector<16x16xi32>
    %2 = arith.subi %0, %1 : vector<16x16xi32>
    %3 = math.absi %2 : vector<16x16xi32>
    %c1_i32 = arith.constant 1 : i32
    %4 = vector.broadcast %c1_i32 : i32 to vector<16x16xi32>
    %5 = arith.cmpi sle, %3, %4 : vector<16x16xi32>
    %6 = arith.extui %5 : vector<16x16xi1> to vector<16x16xi32>
    %7 = arith.sitofp %6 : vector<16x16xi32> to vector<16x16xf32>
    %8 = arith.truncf %7 : vector<16x16xf32> to vector<16x16xbf16>
    %9 = tpu.iota {dimensions = array<i32: 0>} : vector<16x16xi32>
    %10 = tpu.iota {dimensions = array<i32: 1>} : vector<16x16xi32>
    %11 = arith.subi %9, %10 : vector<16x16xi32>
    %12 = math.absi %11 : vector<16x16xi32>
    %c1_i32_0 = arith.constant 1 : i32
    %13 = vector.broadcast %c1_i32_0 : i32 to vector<16x16xi32>
    %14 = arith.cmpi sle, %12, %13 : vector<16x16xi32>
    %15 = arith.extui %14 : vector<16x16xi1> to vector<16x16xi32>
    %16 = arith.sitofp %15 : vector<16x16xi32> to vector<16x16xf32>
    %17 = arith.truncf %16 : vector<16x16xf32> to vector<16x16xbf16>
    %18 = tpu.iota {dimensions = array<i32: 0>} : vector<16x16xi32>
    %19 = tpu.iota {dimensions = array<i32: 1>} : vector<16x16xi32>
    %c0_i32 = arith.constant 0 : i32
    %20 = vector.broadcast %c0_i32 : i32 to vector<16x16xi32>
    %21 = arith.cmpi eq, %18, %20 : vector<16x16xi32>
    %22 = arith.extui %21 : vector<16x16xi1> to vector<16x16xi32>
    %23 = arith.sitofp %22 : vector<16x16xi32> to vector<16x16xf32>
    %cst = arith.constant 3.000000e+00 : f32
    %24 = vector.broadcast %cst : f32 to vector<16x16xf32>
    %25 = arith.subf %24, %23 : vector<16x16xf32>
    %c15_i32 = arith.constant 15 : i32
    %26 = vector.broadcast %c15_i32 : i32 to vector<16x16xi32>
    %27 = arith.cmpi eq, %18, %26 : vector<16x16xi32>
    %28 = arith.extui %27 : vector<16x16xi1> to vector<16x16xi32>
    %29 = arith.sitofp %28 : vector<16x16xi32> to vector<16x16xf32>
    %30 = arith.subf %25, %29 : vector<16x16xf32>
    %c0_i32_1 = arith.constant 0 : i32
    %31 = vector.broadcast %c0_i32_1 : i32 to vector<16x16xi32>
    %32 = arith.cmpi eq, %19, %31 : vector<16x16xi32>
    %33 = arith.extui %32 : vector<16x16xi1> to vector<16x16xi32>
    %34 = arith.sitofp %33 : vector<16x16xi32> to vector<16x16xf32>
    %cst_2 = arith.constant 3.000000e+00 : f32
    %35 = vector.broadcast %cst_2 : f32 to vector<16x16xf32>
    %36 = arith.subf %35, %34 : vector<16x16xf32>
    %c15_i32_3 = arith.constant 15 : i32
    %37 = vector.broadcast %c15_i32_3 : i32 to vector<16x16xi32>
    %38 = arith.cmpi eq, %19, %37 : vector<16x16xi32>
    %39 = arith.extui %38 : vector<16x16xi1> to vector<16x16xi32>
    %40 = arith.sitofp %39 : vector<16x16xi32> to vector<16x16xf32>
    %41 = arith.subf %36, %40 : vector<16x16xf32>
    %42 = arith.mulf %30, %41 : vector<16x16xf32>
    %cst_4 = arith.constant 0.000000e+00 : f32
    %43 = vector.broadcast %cst_4 : f32 to vector<1x1xf32>
    %c0 = arith.constant 0 : index
    %c0_5 = arith.constant 0 : index
    %c0_6 = arith.constant 0 : index
    %c0_7 = arith.constant 0 : index
    %44 = vector.load %arg1[%c0, %c0_5, %c0_6, %c0_7] : memref<2x3x16x16xf32, #tpu.memory_space<vmem>>, vector<1x3x16x16xf32>
    %45 = vector.shape_cast %44 : vector<1x3x16x16xf32> to vector<3x16x16xf32>
    %cst_8 = arith.constant dense<0xFF800000> : vector<16x16xf32>
    %46 = vector.multi_reduction <maximumf>, %45, %cst_8 [0] : vector<3x16x16xf32> to vector<16x16xf32>
    %47 = vector.shape_cast %46 : vector<16x16xf32> to vector<1x16x16xf32>
    %48 = tpu.iota {dimensions = array<i32: 0>} : vector<3x16x16xi32>
    %49 = arith.sitofp %48 : vector<3x16x16xi32> to vector<3x16x16xf32>
    %50 = vector.broadcast %47 : vector<1x16x16xf32> to vector<3x16x16xf32>
    %51 = arith.cmpf oeq, %45, %50 : vector<3x16x16xf32>
    %cst_9 = arith.constant 3.000000e+00 : f32
    %52 = vector.broadcast %cst_9 : f32 to vector<3x16x16xf32>
    %53 = arith.select %51, %49, %52 : vector<3x16x16xi1>, vector<3x16x16xf32>
    %cst_10 = arith.constant dense<0x7F800000> : vector<16x16xf32>
    %54 = vector.multi_reduction <minimumf>, %53, %cst_10 [0] : vector<3x16x16xf32> to vector<16x16xf32>
    %c0_11 = arith.constant 0 : index
    %c0_12 = arith.constant 0 : index
    %c0_13 = arith.constant 0 : index
    %55 = vector.load %arg2[%c0_11, %c0_12, %c0_13] : memref<2x16x16xi32, #tpu.memory_space<vmem>>, vector<1x16x16xi32>
    %56 = vector.shape_cast %55 : vector<1x16x16xi32> to vector<16x16xi32>
    %c1_i32_14 = arith.constant 1 : i32
    %57 = vector.broadcast %c1_i32_14 : i32 to vector<16x16xi32>
    %58 = arith.cmpi eq, %56, %57 : vector<16x16xi32>
    %59 = arith.extui %58 : vector<16x16xi1> to vector<16x16xi32>
    %60 = arith.sitofp %59 : vector<16x16xi32> to vector<16x16xf32>
    %61 = arith.truncf %60 : vector<16x16xf32> to vector<16x16xbf16>
    %c2_i32 = arith.constant 2 : i32
    %62 = vector.broadcast %c2_i32 : i32 to vector<16x16xi32>
    %63 = arith.cmpi eq, %56, %62 : vector<16x16xi32>
    %64 = arith.extui %63 : vector<16x16xi1> to vector<16x16xi32>
    %65 = arith.sitofp %64 : vector<16x16xi32> to vector<16x16xf32>
    %66 = arith.truncf %65 : vector<16x16xf32> to vector<16x16xbf16>
    %cst_15 = arith.constant dense<0.000000e+00> : vector<16x16xf32>
    %67 = tpu.matmul %61, %17, %cst_15 {dimension_numbers = #tpu.dot_dimension_numbers<[1], [0], [0], [1], [0, 0, 1, 1], [], []>} : vector<16x16xbf16>, vector<16x16xbf16>, vector<16x16xf32> -> vector<16x16xf32>
    %68 = arith.truncf %67 : vector<16x16xf32> to vector<16x16xbf16>
    %cst_16 = arith.constant dense<0.000000e+00> : vector<16x16xf32>
    %69 = tpu.matmul %8, %68, %cst_16 {dimension_numbers = #tpu.dot_dimension_numbers<[1], [0], [0], [1], [0, 0, 1, 1], [], []>} : vector<16x16xbf16>, vector<16x16xbf16>, vector<16x16xf32> -> vector<16x16xf32>
    %cst_17 = arith.constant dense<0.000000e+00> : vector<16x16xf32>
    %70 = tpu.matmul %66, %17, %cst_17 {dimension_numbers = #tpu.dot_dimension_numbers<[1], [0], [0], [1], [0, 0, 1, 1], [], []>} : vector<16x16xbf16>, vector<16x16xbf16>, vector<16x16xf32> -> vector<16x16xf32>
    %71 = arith.truncf %70 : vector<16x16xf32> to vector<16x16xbf16>
    %cst_18 = arith.constant dense<0.000000e+00> : vector<16x16xf32>
    %72 = tpu.matmul %8, %71, %cst_18 {dimension_numbers = #tpu.dot_dimension_numbers<[1], [0], [0], [1], [0, 0, 1, 1], [], []>} : vector<16x16xbf16>, vector<16x16xbf16>, vector<16x16xf32> -> vector<16x16xf32>
    %cst_19 = arith.constant 5.000000e-01 : f32
    %73 = vector.broadcast %cst_19 : f32 to vector<16x16xf32>
    %74 = arith.cmpf ogt, %69, %73 : vector<16x16xf32>
    %cst_20 = arith.constant 5.000000e-01 : f32
    %75 = vector.broadcast %cst_20 : f32 to vector<16x16xf32>
    %76 = arith.cmpf ogt, %72, %75 : vector<16x16xf32>
    %cst_21 = arith.constant 5.000000e-01 : f32
    %77 = vector.broadcast %cst_21 : f32 to vector<16x16xf32>
    %78 = arith.subf %42, %77 : vector<16x16xf32>
    %79 = arith.cmpf ogt, %69, %78 : vector<16x16xf32>
    %cst_22 = arith.constant 5.000000e-01 : f32
    %80 = vector.broadcast %cst_22 : f32 to vector<16x16xf32>
    %81 = arith.subf %42, %80 : vector<16x16xf32>
    %82 = arith.cmpf ogt, %72, %81 : vector<16x16xf32>
    %cst_23 = arith.constant 1.000000e+00 : f32
    %83 = vector.broadcast %cst_23 : f32 to vector<16x16xf32>
    %84 = arith.cmpf oeq, %54, %83 : vector<16x16xf32>
    %cst_24 = arith.constant 2.000000e+00 : f32
    %85 = vector.broadcast %cst_24 : f32 to vector<16x16xf32>
    %86 = arith.cmpf oeq, %54, %85 : vector<16x16xf32>
    %cst_25 = arith.constant dense<true> : vector<16x16xi1>
    %87 = arith.xori %74, %cst_25 : vector<16x16xi1>
    %88 = arith.andi %87, %84 : vector<16x16xi1>
    %89 = arith.extui %88 : vector<16x16xi1> to vector<16x16xi32>
    %90 = arith.sitofp %89 : vector<16x16xi32> to vector<16x16xf32>
    %91 = vector.shape_cast %90 : vector<16x16xf32> to vector<1x16x16xf32>
    %cst_26 = arith.constant dense<0.000000e+00> : vector<1xf32>
    %92 = vector.multi_reduction <add>, %91, %cst_26 [1, 2] : vector<1x16x16xf32> to vector<1xf32>
    %93 = vector.shape_cast %92 : vector<1xf32> to vector<1x1x1xf32>
    %94 = vector.extract %93[0, 0, 0] : f32 from vector<1x1x1xf32>
    %95 = vector.broadcast %94 : f32 to vector<1x1xf32>
    %cst_27 = arith.constant dense<true> : vector<16x16xi1>
    %96 = arith.xori %76, %cst_27 : vector<16x16xi1>
    %97 = arith.andi %96, %86 : vector<16x16xi1>
    %98 = arith.extui %97 : vector<16x16xi1> to vector<16x16xi32>
    %99 = arith.sitofp %98 : vector<16x16xi32> to vector<16x16xf32>
    %100 = vector.shape_cast %99 : vector<16x16xf32> to vector<1x16x16xf32>
    %cst_28 = arith.constant dense<0.000000e+00> : vector<1xf32>
    %101 = vector.multi_reduction <add>, %100, %cst_28 [1, 2] : vector<1x16x16xf32> to vector<1xf32>
    %102 = vector.shape_cast %101 : vector<1xf32> to vector<1x1x1xf32>
    %103 = vector.extract %102[0, 0, 0] : f32 from vector<1x1x1xf32>
    %104 = vector.broadcast %103 : f32 to vector<1x1xf32>
    %105 = arith.addf %95, %104 : vector<1x1xf32>
    %cst_29 = arith.constant dense<true> : vector<16x16xi1>
    %106 = arith.xori %84, %cst_29 : vector<16x16xi1>
    %107 = arith.andi %79, %106 : vector<16x16xi1>
    %108 = arith.extui %107 : vector<16x16xi1> to vector<16x16xi32>
    %109 = arith.sitofp %108 : vector<16x16xi32> to vector<16x16xf32>
    %110 = vector.shape_cast %109 : vector<16x16xf32> to vector<1x16x16xf32>
    %cst_30 = arith.constant dense<0.000000e+00> : vector<1xf32>
    %111 = vector.multi_reduction <add>, %110, %cst_30 [1, 2] : vector<1x16x16xf32> to vector<1xf32>
    %112 = vector.shape_cast %111 : vector<1xf32> to vector<1x1x1xf32>
    %113 = vector.extract %112[0, 0, 0] : f32 from vector<1x1x1xf32>
    %114 = vector.broadcast %113 : f32 to vector<1x1xf32>
    %cst_31 = arith.constant dense<true> : vector<16x16xi1>
    %115 = arith.xori %86, %cst_31 : vector<16x16xi1>
    %116 = arith.andi %82, %115 : vector<16x16xi1>
    %117 = arith.extui %116 : vector<16x16xi1> to vector<16x16xi32>
    %118 = arith.sitofp %117 : vector<16x16xi32> to vector<16x16xf32>
    %119 = vector.shape_cast %118 : vector<16x16xf32> to vector<1x16x16xf32>
    %cst_32 = arith.constant dense<0.000000e+00> : vector<1xf32>
    %120 = vector.multi_reduction <add>, %119, %cst_32 [1, 2] : vector<1x16x16xf32> to vector<1xf32>
    %121 = vector.shape_cast %120 : vector<1xf32> to vector<1x1x1xf32>
    %122 = vector.extract %121[0, 0, 0] : f32 from vector<1x1x1xf32>
    %123 = vector.broadcast %122 : f32 to vector<1x1xf32>
    %124 = arith.addf %114, %123 : vector<1x1xf32>
    %125 = arith.extui %84 : vector<16x16xi1> to vector<16x16xi32>
    %126 = arith.sitofp %125 : vector<16x16xi32> to vector<16x16xf32>
    %127 = vector.shape_cast %126 : vector<16x16xf32> to vector<1x16x16xf32>
    %cst_33 = arith.constant dense<0.000000e+00> : vector<1xf32>
    %128 = vector.multi_reduction <add>, %127, %cst_33 [1, 2] : vector<1x16x16xf32> to vector<1xf32>
    %129 = vector.shape_cast %128 : vector<1xf32> to vector<1x1x1xf32>
    %130 = vector.extract %129[0, 0, 0] : f32 from vector<1x1x1xf32>
    %131 = vector.broadcast %130 : f32 to vector<1x1xf32>
    %132 = arith.extui %86 : vector<16x16xi1> to vector<16x16xi32>
    %133 = arith.sitofp %132 : vector<16x16xi32> to vector<16x16xf32>
    %134 = vector.shape_cast %133 : vector<16x16xf32> to vector<1x16x16xf32>
    %cst_34 = arith.constant dense<0.000000e+00> : vector<1xf32>
    %135 = vector.multi_reduction <add>, %134, %cst_34 [1, 2] : vector<1x16x16xf32> to vector<1xf32>
    %136 = vector.shape_cast %135 : vector<1xf32> to vector<1x1x1xf32>
    %137 = vector.extract %136[0, 0, 0] : f32 from vector<1x1x1xf32>
    %138 = vector.broadcast %137 : f32 to vector<1x1xf32>
    %139 = arith.addf %131, %138 : vector<1x1xf32>
    %140 = arith.subf %139, %105 : vector<1x1xf32>
    %141 = arith.addf %105, %124 : vector<1x1xf32>
    %142 = arith.addf %141, %140 : vector<1x1xf32>
    %cst_35 = arith.constant 2.560000e+02 : f32
    %143 = vector.broadcast %cst_35 : f32 to vector<1x1xf32>
    %144 = arith.subf %143, %142 : vector<1x1xf32>
    %145 = arith.addf %140, %124 : vector<1x1xf32>
    %146 = arith.divf %140, %145 : vector<1x1xf32>
    %147 = arith.addf %144, %105 : vector<1x1xf32>
    %148 = arith.divf %144, %147 : vector<1x1xf32>
    %149 = arith.addf %146, %148 : vector<1x1xf32>
    %cst_36 = arith.constant 5.000000e-01 : f32
    %150 = vector.broadcast %cst_36 : f32 to vector<1x1xf32>
    %151 = arith.mulf %150, %149 : vector<1x1xf32>
    %152 = arith.addf %43, %151 : vector<1x1xf32>
    %c1 = arith.constant 1 : index
    %c0_37 = arith.constant 0 : index
    %c0_38 = arith.constant 0 : index
    %c0_39 = arith.constant 0 : index
    %153 = vector.load %arg1[%c1, %c0_37, %c0_38, %c0_39] : memref<2x3x16x16xf32, #tpu.memory_space<vmem>>, vector<1x3x16x16xf32>
    %154 = vector.shape_cast %153 : vector<1x3x16x16xf32> to vector<3x16x16xf32>
    %cst_40 = arith.constant dense<0xFF800000> : vector<16x16xf32>
    %155 = vector.multi_reduction <maximumf>, %154, %cst_40 [0] : vector<3x16x16xf32> to vector<16x16xf32>
    %156 = vector.shape_cast %155 : vector<16x16xf32> to vector<1x16x16xf32>
    %157 = tpu.iota {dimensions = array<i32: 0>} : vector<3x16x16xi32>
    %158 = arith.sitofp %157 : vector<3x16x16xi32> to vector<3x16x16xf32>
    %159 = vector.broadcast %156 : vector<1x16x16xf32> to vector<3x16x16xf32>
    %160 = arith.cmpf oeq, %154, %159 : vector<3x16x16xf32>
    %cst_41 = arith.constant 3.000000e+00 : f32
    %161 = vector.broadcast %cst_41 : f32 to vector<3x16x16xf32>
    %162 = arith.select %160, %158, %161 : vector<3x16x16xi1>, vector<3x16x16xf32>
    %cst_42 = arith.constant dense<0x7F800000> : vector<16x16xf32>
    %163 = vector.multi_reduction <minimumf>, %162, %cst_42 [0] : vector<3x16x16xf32> to vector<16x16xf32>
    %c1_43 = arith.constant 1 : index
    %c0_44 = arith.constant 0 : index
    %c0_45 = arith.constant 0 : index
    %164 = vector.load %arg2[%c1_43, %c0_44, %c0_45] : memref<2x16x16xi32, #tpu.memory_space<vmem>>, vector<1x16x16xi32>
    %165 = vector.shape_cast %164 : vector<1x16x16xi32> to vector<16x16xi32>
    %c1_i32_46 = arith.constant 1 : i32
    %166 = vector.broadcast %c1_i32_46 : i32 to vector<16x16xi32>
    %167 = arith.cmpi eq, %165, %166 : vector<16x16xi32>
    %168 = arith.extui %167 : vector<16x16xi1> to vector<16x16xi32>
    %169 = arith.sitofp %168 : vector<16x16xi32> to vector<16x16xf32>
    %170 = arith.truncf %169 : vector<16x16xf32> to vector<16x16xbf16>
    %c2_i32_47 = arith.constant 2 : i32
    %171 = vector.broadcast %c2_i32_47 : i32 to vector<16x16xi32>
    %172 = arith.cmpi eq, %165, %171 : vector<16x16xi32>
    %173 = arith.extui %172 : vector<16x16xi1> to vector<16x16xi32>
    %174 = arith.sitofp %173 : vector<16x16xi32> to vector<16x16xf32>
    %175 = arith.truncf %174 : vector<16x16xf32> to vector<16x16xbf16>
    %cst_48 = arith.constant dense<0.000000e+00> : vector<16x16xf32>
    %176 = tpu.matmul %170, %17, %cst_48 {dimension_numbers = #tpu.dot_dimension_numbers<[1], [0], [0], [1], [0, 0, 1, 1], [], []>} : vector<16x16xbf16>, vector<16x16xbf16>, vector<16x16xf32> -> vector<16x16xf32>
    %177 = arith.truncf %176 : vector<16x16xf32> to vector<16x16xbf16>
    %cst_49 = arith.constant dense<0.000000e+00> : vector<16x16xf32>
    %178 = tpu.matmul %8, %177, %cst_49 {dimension_numbers = #tpu.dot_dimension_numbers<[1], [0], [0], [1], [0, 0, 1, 1], [], []>} : vector<16x16xbf16>, vector<16x16xbf16>, vector<16x16xf32> -> vector<16x16xf32>
    %cst_50 = arith.constant dense<0.000000e+00> : vector<16x16xf32>
    %179 = tpu.matmul %175, %17, %cst_50 {dimension_numbers = #tpu.dot_dimension_numbers<[1], [0], [0], [1], [0, 0, 1, 1], [], []>} : vector<16x16xbf16>, vector<16x16xbf16>, vector<16x16xf32> -> vector<16x16xf32>
    %180 = arith.truncf %179 : vector<16x16xf32> to vector<16x16xbf16>
    %cst_51 = arith.constant dense<0.000000e+00> : vector<16x16xf32>
    %181 = tpu.matmul %8, %180, %cst_51 {dimension_numbers = #tpu.dot_dimension_numbers<[1], [0], [0], [1], [0, 0, 1, 1], [], []>} : vector<16x16xbf16>, vector<16x16xbf16>, vector<16x16xf32> -> vector<16x16xf32>
    %cst_52 = arith.constant 5.000000e-01 : f32
    %182 = vector.broadcast %cst_52 : f32 to vector<16x16xf32>
    %183 = arith.cmpf ogt, %178, %182 : vector<16x16xf32>
    %cst_53 = arith.constant 5.000000e-01 : f32
    %184 = vector.broadcast %cst_53 : f32 to vector<16x16xf32>
    %185 = arith.cmpf ogt, %181, %184 : vector<16x16xf32>
    %cst_54 = arith.constant 5.000000e-01 : f32
    %186 = vector.broadcast %cst_54 : f32 to vector<16x16xf32>
    %187 = arith.subf %42, %186 : vector<16x16xf32>
    %188 = arith.cmpf ogt, %178, %187 : vector<16x16xf32>
    %cst_55 = arith.constant 5.000000e-01 : f32
    %189 = vector.broadcast %cst_55 : f32 to vector<16x16xf32>
    %190 = arith.subf %42, %189 : vector<16x16xf32>
    %191 = arith.cmpf ogt, %181, %190 : vector<16x16xf32>
    %cst_56 = arith.constant 1.000000e+00 : f32
    %192 = vector.broadcast %cst_56 : f32 to vector<16x16xf32>
    %193 = arith.cmpf oeq, %163, %192 : vector<16x16xf32>
    %cst_57 = arith.constant 2.000000e+00 : f32
    %194 = vector.broadcast %cst_57 : f32 to vector<16x16xf32>
    %195 = arith.cmpf oeq, %163, %194 : vector<16x16xf32>
    %cst_58 = arith.constant dense<true> : vector<16x16xi1>
    %196 = arith.xori %183, %cst_58 : vector<16x16xi1>
    %197 = arith.andi %196, %193 : vector<16x16xi1>
    %198 = arith.extui %197 : vector<16x16xi1> to vector<16x16xi32>
    %199 = arith.sitofp %198 : vector<16x16xi32> to vector<16x16xf32>
    %200 = vector.shape_cast %199 : vector<16x16xf32> to vector<1x16x16xf32>
    %cst_59 = arith.constant dense<0.000000e+00> : vector<1xf32>
    %201 = vector.multi_reduction <add>, %200, %cst_59 [1, 2] : vector<1x16x16xf32> to vector<1xf32>
    %202 = vector.shape_cast %201 : vector<1xf32> to vector<1x1x1xf32>
    %203 = vector.extract %202[0, 0, 0] : f32 from vector<1x1x1xf32>
    %204 = vector.broadcast %203 : f32 to vector<1x1xf32>
    %cst_60 = arith.constant dense<true> : vector<16x16xi1>
    %205 = arith.xori %185, %cst_60 : vector<16x16xi1>
    %206 = arith.andi %205, %195 : vector<16x16xi1>
    %207 = arith.extui %206 : vector<16x16xi1> to vector<16x16xi32>
    %208 = arith.sitofp %207 : vector<16x16xi32> to vector<16x16xf32>
    %209 = vector.shape_cast %208 : vector<16x16xf32> to vector<1x16x16xf32>
    %cst_61 = arith.constant dense<0.000000e+00> : vector<1xf32>
    %210 = vector.multi_reduction <add>, %209, %cst_61 [1, 2] : vector<1x16x16xf32> to vector<1xf32>
    %211 = vector.shape_cast %210 : vector<1xf32> to vector<1x1x1xf32>
    %212 = vector.extract %211[0, 0, 0] : f32 from vector<1x1x1xf32>
    %213 = vector.broadcast %212 : f32 to vector<1x1xf32>
    %214 = arith.addf %204, %213 : vector<1x1xf32>
    %cst_62 = arith.constant dense<true> : vector<16x16xi1>
    %215 = arith.xori %193, %cst_62 : vector<16x16xi1>
    %216 = arith.andi %188, %215 : vector<16x16xi1>
    %217 = arith.extui %216 : vector<16x16xi1> to vector<16x16xi32>
    %218 = arith.sitofp %217 : vector<16x16xi32> to vector<16x16xf32>
    %219 = vector.shape_cast %218 : vector<16x16xf32> to vector<1x16x16xf32>
    %cst_63 = arith.constant dense<0.000000e+00> : vector<1xf32>
    %220 = vector.multi_reduction <add>, %219, %cst_63 [1, 2] : vector<1x16x16xf32> to vector<1xf32>
    %221 = vector.shape_cast %220 : vector<1xf32> to vector<1x1x1xf32>
    %222 = vector.extract %221[0, 0, 0] : f32 from vector<1x1x1xf32>
    %223 = vector.broadcast %222 : f32 to vector<1x1xf32>
    %cst_64 = arith.constant dense<true> : vector<16x16xi1>
    %224 = arith.xori %195, %cst_64 : vector<16x16xi1>
    %225 = arith.andi %191, %224 : vector<16x16xi1>
    %226 = arith.extui %225 : vector<16x16xi1> to vector<16x16xi32>
    %227 = arith.sitofp %226 : vector<16x16xi32> to vector<16x16xf32>
    %228 = vector.shape_cast %227 : vector<16x16xf32> to vector<1x16x16xf32>
    %cst_65 = arith.constant dense<0.000000e+00> : vector<1xf32>
    %229 = vector.multi_reduction <add>, %228, %cst_65 [1, 2] : vector<1x16x16xf32> to vector<1xf32>
    %230 = vector.shape_cast %229 : vector<1xf32> to vector<1x1x1xf32>
    %231 = vector.extract %230[0, 0, 0] : f32 from vector<1x1x1xf32>
    %232 = vector.broadcast %231 : f32 to vector<1x1xf32>
    %233 = arith.addf %223, %232 : vector<1x1xf32>
    %234 = arith.extui %193 : vector<16x16xi1> to vector<16x16xi32>
    %235 = arith.sitofp %234 : vector<16x16xi32> to vector<16x16xf32>
    %236 = vector.shape_cast %235 : vector<16x16xf32> to vector<1x16x16xf32>
    %cst_66 = arith.constant dense<0.000000e+00> : vector<1xf32>
    %237 = vector.multi_reduction <add>, %236, %cst_66 [1, 2] : vector<1x16x16xf32> to vector<1xf32>
    %238 = vector.shape_cast %237 : vector<1xf32> to vector<1x1x1xf32>
    %239 = vector.extract %238[0, 0, 0] : f32 from vector<1x1x1xf32>
    %240 = vector.broadcast %239 : f32 to vector<1x1xf32>
    %241 = arith.extui %195 : vector<16x16xi1> to vector<16x16xi32>
    %242 = arith.sitofp %241 : vector<16x16xi32> to vector<16x16xf32>
    %243 = vector.shape_cast %242 : vector<16x16xf32> to vector<1x16x16xf32>
    %cst_67 = arith.constant dense<0.000000e+00> : vector<1xf32>
    %244 = vector.multi_reduction <add>, %243, %cst_67 [1, 2] : vector<1x16x16xf32> to vector<1xf32>
    %245 = vector.shape_cast %244 : vector<1xf32> to vector<1x1x1xf32>
    %246 = vector.extract %245[0, 0, 0] : f32 from vector<1x1x1xf32>
    %247 = vector.broadcast %246 : f32 to vector<1x1xf32>
    %248 = arith.addf %240, %247 : vector<1x1xf32>
    %249 = arith.subf %248, %214 : vector<1x1xf32>
    %250 = arith.addf %214, %233 : vector<1x1xf32>
    %251 = arith.addf %250, %249 : vector<1x1xf32>
    %cst_68 = arith.constant 2.560000e+02 : f32
    %252 = vector.broadcast %cst_68 : f32 to vector<1x1xf32>
    %253 = arith.subf %252, %251 : vector<1x1xf32>
    %254 = arith.addf %249, %233 : vector<1x1xf32>
    %255 = arith.divf %249, %254 : vector<1x1xf32>
    %256 = arith.addf %253, %214 : vector<1x1xf32>
    %257 = arith.divf %253, %256 : vector<1x1xf32>
    %258 = arith.addf %255, %257 : vector<1x1xf32>
    %cst_69 = arith.constant 5.000000e-01 : f32
    %259 = vector.broadcast %cst_69 : f32 to vector<1x1xf32>
    %260 = arith.mulf %259, %258 : vector<1x1xf32>
    %261 = arith.addf %152, %260 : vector<1x1xf32>
    %c0_70 = arith.constant 0 : index
    %c0_71 = arith.constant 0 : index
    %c0_72 = arith.constant 0 : index
    %262 = vector.load %arg3[%c0_70, %c0_71, %c0_72] : memref<1x1x1xf32, #tpu.memory_space<vmem>>, vector<1x1x1xf32>
    %263 = vector.shape_cast %262 : vector<1x1x1xf32> to vector<1x1xf32>
    %264 = vector.shape_cast %261 : vector<1x1xf32> to vector<1x1x1xf32>
    tpu.vector_store %arg3[%c0_70, %c0_71, %c0_72], %264 {strides = array<i32>} : memref<1x1x1xf32, #tpu.memory_space<vmem>>, vector<1x1x1xf32>,
    return
  }
  func.func @transform_0(%arg0: i32) -> (i32, i32, i32, i32) {
    %c0_i32 = arith.constant 0 : i32
    %c0_i32_0 = arith.constant 0 : i32
    %c0_i32_1 = arith.constant 0 : i32
    %c0_i32_2 = arith.constant 0 : i32
    return %arg0, %c0_i32, %c0_i32_0, %c0_i32_1 : i32, i32, i32, i32
  }
  func.func @transform_1(%arg0: i32) -> (i32, i32, i32) {
    %c0_i32 = arith.constant 0 : i32
    %c0_i32_0 = arith.constant 0 : i32
    %c0_i32_1 = arith.constant 0 : i32
    return %arg0, %c0_i32, %c0_i32_0 : i32, i32, i32
  }
  func.func @transform_2(%arg0: i32) -> (i32, i32, i32) {
    %c0_i32 = arith.constant 0 : i32
    %c0_i32_0 = arith.constant 0 : i32
    %c0_i32_1 = arith.constant 0 : i32
    return %arg0, %c0_i32, %c0_i32_0 : i32, i32, i32
  }
}

</mosaic_0001>

<llo_original>
// kernel: mask_mean_metric.1
$region0: #{mask_mean_metric.1}
  #allocation0 [shape = 'u32[]', space=smem, size = 0x4, offset = 0x4, fixed_abs, tag = 'smem constant byte address 0x4 - core index']
  #allocation1 [shape = 'u32[144,128]{1,0:T(1,128)}', space=vmem, size = 0x12000, scoped, tag = 'internal scratch']
  %s0 = inlined_call_operand.hbm [shape: f32[2,3,16,16], index: 0, kind: input, shape index: {}]
  %s1 = inlined_call_operand.hbm [shape: s32[2,16,16], index: 1, kind: input, shape index: {}]
  %s2 = inlined_call_operand.hbm [shape: f32[1,1,1], index: 2, kind: output, shape index: {}]
  %s3 = sld [smem:[#allocation0]]
  $region26: #{mask_mean_metric.1} parent=0
    _
  %s5 = ssub.s32 1, %s3
  %s6 = scalar_select 0, %s5, %s3
  $region1: #{mask_mean_metric.1} parent=0
    #allocation2 [shape = 'u8[49152]{0}', space=vmem, size = 0xc000, scoped, tag = 'input window, operand 0, single buffered']
    #allocation3 [shape = 's32[1]{0}', space=sflag, size = 0x4, scoped, tag = 'scoped memory for mask_mean_metric.1']
    #allocation4 [shape = 's32[1]{0}', space=sflag, size = 0x4, scoped, tag = 'scoped memory for mask_mean_metric.1']
    #allocation5 [shape = 'u8[16384]{0}', space=vmem, size = 0x4000, scoped, tag = 'input window, operand 1, single buffered']
    #allocation6 [shape = 's32[1]{0}', space=sflag, size = 0x4, scoped, tag = 'scoped memory for mask_mean_metric.1']
    #allocation7 [shape = 'u8[512]{0}', space=vmem, size = 0x400, scoped, tag = 'output window, operand 0, single buffered']
    %7 = vsyncpa [#allocation3], 0
    %8 = vsyncpa [#allocation6], 0
    %9 = vsyncpa [#allocation4], 0
    // Predicated region
    $region2: #{mask_mean_metric.1} parent=1 // pred_check
      _
    $region3: #{mask_mean_metric.1} parent=1 // pred_check_branch
      %11 = sbr.rel (0) target = $region5
    $region4: #{mask_mean_metric.1} parent=1 // pred_region
      %s13 = ssub.s32 1536, 1536
      %14 = vsyncadd [#allocation3], %s13
      %s15 = sshll.u32 [#allocation2], 4
      %s16 = int_to_ptr.vmem [resolvable:$true] %s15
      %21 = dma.hbm_to_vmem [thread:$0]  %s0, 1536, %s16, [#allocation3], 128, 128, 8
    $region5: #{mask_mean_metric.1} parent=1 // pred_fallthru
      _
    // Predicated region
    $region6: #{mask_mean_metric.1} parent=1 // pred_check
      _
    $region7: #{mask_mean_metric.1} parent=1 // pred_check_branch
      %23 = sbr.rel (0) target = $region9
    $region8: #{mask_mean_metric.1} parent=1 // pred_region
      %s25 = ssub.s32 512, 512
      %26 = vsyncadd [#allocation6], %s25
      %s27 = sshll.u32 [#allocation5], 4
      %s28 = int_to_ptr.vmem [resolvable:$true] %s27
      %33 = dma.hbm_to_vmem [thread:$0]  %s1, 512, %s28, [#allocation6], 128, 128, 8
    $region9: #{mask_mean_metric.1} parent=1 // pred_fallthru
      _
    // Predicated region
    $region10: #{mask_mean_metric.1} parent=1 // pred_check
      _
    $region11: #{mask_mean_metric.1} parent=1 // pred_check_branch
      %35 = sbr.rel (0) target = $region13
    $region12: #{mask_mean_metric.1} parent=1 // pred_region
      %36 = dma.done [#allocation3], 1536
    $region13: #{mask_mean_metric.1} parent=1 // pred_fallthru
      _
    // Predicated region
    $region14: #{mask_mean_metric.1} parent=1 // pred_check
      _
    $region15: #{mask_mean_metric.1} parent=1 // pred_check_branch
      %38 = sbr.rel (0) target = $region17
    $region16: #{mask_mean_metric.1} parent=1 // pred_region
      %39 = dma.done [#allocation6], 512
    $region17: #{mask_mean_metric.1} parent=1 // pred_fallthru
      _
    %v41 = vlaneseq
    %v42 = vshrl.u32 %v41, 7
    %v43 = vadd.s32 %v42, 8
    %v44 = vlaneseq
    %v45 = vand.u32 %v44, 127
    %v46 = vsub.s32 %v42, %v45
    %v47 = vsub.s32 %v43, %v45
    %vm48 = vcmp.lt.s32.totalorder %v46, 0
    %v49 = vsub.s32 0, %v46
    %v50 = vsel %vm48, %v49, %v46
    %vm51 = vcmp.lt.s32.totalorder %v47, 0
    %v52 = vsub.s32 0, %v47
    %v53 = vsel %vm51, %v52, %v47
    %vm54 = vcmp.le.s32.totalorder %v50, 1
    %vm55 = vcmp.le.s32.totalorder %v53, 1
    %v56 = vsel %vm54, 1, 0
    %v57 = vsel %vm55, 1, 0
    %v58 = vcvt.s32.f32 %v56
    %v59 = vcvt.s32.f32 %v57
    %v60 = vpack.c.bf16 %v59, %v58
    %vm61 = vcmp.eq.s32.totalorder %v42, 0
    %vm62 = vcmp.eq.s32.totalorder %v43, 0
    %v63 = vsel %vm61, 1, 0
    %v64 = vsel %vm62, 1, 0
    %v65 = vcvt.s32.f32 %v63
    %v66 = vcvt.s32.f32 %v64
    %v67 = vsub.f32 3.0, %v65
    %v68 = vsub.f32 3.0, %v66
    %vm69 = vcmp.eq.s32.totalorder %v42, 15
    %vm70 = vcmp.eq.s32.totalorder %v43, 15
    %v71 = vsel %vm69, 1, 0
    %v72 = vsel %vm70, 1, 0
    %v73 = vcvt.s32.f32 %v71
    %v74 = vcvt.s32.f32 %v72
    %v75 = vsub.f32 %v67, %v73
    %v76 = vsub.f32 %v68, %v74
    %vm77 = vcmp.eq.s32.totalorder %v45, 0
    %v78 = vsel %vm77, 1, 0
    %v79 = vcvt.s32.f32 %v78
    %v80 = vsub.f32 3.0, %v79
    %vm81 = vcmp.eq.s32.totalorder %v45, 15
    %v82 = vsel %vm81, 1, 0
    %v83 = vcvt.s32.f32 %v82
    %v84 = vsub.f32 %v80, %v83
    %v85 = vmul.f32 %v75, %v84
    %v86 = vmul.f32 %v76, %v84
    %v87 = vld [vmem:[#allocation2] sm:$0xff]
    %v88 = vld [vmem:[#allocation2 + $0x8] sm:$0xff]
    %v89 = vld [vmem:[#allocation2 + $0x10] sm:$0xff]
    %v90 = vld [vmem:[#allocation2 + $0x18] sm:$0xff]
    %v91 = vld [vmem:[#allocation2 + $0x20] sm:$0xff]
    %v92 = vld [vmem:[#allocation2 + $0x28] sm:$0xff]
    %vm93 = vcmask 130048
    %v94 = vsel %vm93, %v87, -inf
    %v95 = vsel %vm93, %v89, -inf
    %v96 = vsel %vm93, %v91, -inf
    %v97 = vmax.f32 %v94, %v96
    %v98 = vmax.f32 %v97, %v95
    %v99 = vsel %vm93, %v88, -inf
    %v100 = vsel %vm93, %v90, -inf
    %v101 = vsel %vm93, %v92, -inf
    %v102 = vmax.f32 %v99, %v101
    %v103 = vmax.f32 %v102, %v100
    %v104 = vcvt.s32.f32 0
    %v105 = vcvt.s32.f32 1
    %v106 = vcvt.s32.f32 2
    %vm107 = vcmp.eq.f32.partialorder %v87, %v98
    %vm108 = vcmp.eq.f32.partialorder %v88, %v103
    %vm109 = vcmp.eq.f32.partialorder %v89, %v98
    %vm110 = vcmp.eq.f32.partialorder %v90, %v103
    %vm111 = vcmp.eq.f32.partialorder %v91, %v98
    %vm112 = vcmp.eq.f32.partialorder %v92, %v103
    %v113 = vsel %vm107, %v104, 3.0
    %v114 = vsel %vm108, %v104, 3.0
    %v115 = vsel %vm109, %v105, 3.0
    %v116 = vsel %vm110, %v105, 3.0
    %v117 = vsel %vm111, %v106, 3.0
    %v118 = vsel %vm112, %v106, 3.0
    %v119 = vsel %vm93, %v113, inf
    %v120 = vsel %vm93, %v115, inf
    %v121 = vsel %vm93, %v117, inf
    %v122 = vmin.f32 %v119, %v121
    %v123 = vmin.f32 %v122, %v120
    %v124 = vsel %vm93, %v114, inf
    %v125 = vsel %vm93, %v116, inf
    %v126 = vsel %vm93, %v118, inf
    %v127 = vmin.f32 %v124, %v126
    %v128 = vmin.f32 %v127, %v125
    %v129 = vld [vmem:[#allocation5] sm:$0xff]
    %v130 = vld [vmem:[#allocation5 + $0x8] sm:$0xff]
    %vm131 = vcmp.eq.s32.totalorder %v129, 1
    %vm132 = vcmp.eq.s32.totalorder %v130, 1
    %v133 = vsel %vm131, 1, 0
    %v134 = vsel %vm132, 1, 0
    %v135 = vcvt.s32.f32 %v133
    %v136 = vcvt.s32.f32 %v134
    %v137 = vpack.c.bf16 %v136, %v135
    %vm138 = vcmp.eq.s32.totalorder %v129, 2
    %vm139 = vcmp.eq.s32.totalorder %v130, 2
    %v140 = vsel %vm138, 1, 0
    %v141 = vsel %vm139, 1, 0
    %v142 = vcvt.s32.f32 %v140
    %v143 = vcvt.s32.f32 %v141
    %v144 = vpack.c.bf16 %v143, %v142
    %v146 = vsel %vm93, %v137, 0
    %148 = vmatprep.subr.bf16.mxu0 0
    %149 = vmatpush1.bf16.msra.mxu0 0
    %150 = vmatprep.subr.bf16.mxu0 0
    %151 = vmatpush1.bf16.msra.mxu0 0
    %152 = vmatprep.subr.bf16.mxu0 0
    %153 = vmatpush1.bf16.msra.mxu0 0
    %154 = vmatprep.subr.bf16.mxu0 0
    %155 = vmatpush1.bf16.msra.mxu0 0
    %156 = vmatprep.subr.bf16.mxu0 0
    %157 = vmatpush1.bf16.msra.mxu0 0
    %158 = vmatprep.subr.bf16.mxu0 0
    %159 = vmatpush1.bf16.msra.mxu0 0
    %160 = vmatprep.subr.bf16.mxu0 0
    %161 = vmatpush1.bf16.msra.mxu0 0
    %162 = vmatprep.subr.bf16.mxu0 0
    %163 = vmatpush1.bf16.msra.mxu0 %v60
    %164 = vmatprep.subr.bf16.mxu0 0
    %165 = vmatpush2.bf16.msra.mxu0 0
    %166 = vmatprep.subr.bf16.mxu0 0
    %167 = vmatpush2.bf16.msra.mxu0 0
    %168 = vmatprep.subr.bf16.mxu0 0
    %169 = vmatpush2.bf16.msra.mxu0 0
    %170 = vmatprep.subr.bf16.mxu0 0
    %171 = vmatpush2.bf16.msra.mxu0 0
    %172 = vmatprep.subr.bf16.mxu0 0
    %173 = vmatpush2.bf16.msra.mxu0 0
    %174 = vmatprep.subr.bf16.mxu0 0
    %175 = vmatpush2.bf16.msra.mxu0 0
    %176 = vmatprep.subr.bf16.mxu0 0
    %177 = vmatpush2.bf16.msra.mxu0 0
    %178 = vmatprep.subr.bf16.mxu0 0
    %179 = vmatpush2.bf16.msra.mxu0 0
    %180 = vmatprep.mubr.bf16.mxu0 0
    %181 = vmatmul.mubr.bf16.gmra.mxu0 %v146
    %v182 = vpop.f32.mrf.mxu0
    %v183 = vadd.f32 0.0, %v182
    %v184 = vpop.f32.mrf.mxu0
    %v185 = vpop.f32.mrf.mxu0
    %v186 = vadd.f32 0.0, %v185
    %v187 = vpop.f32.mrf.mxu0
    %188 = vdwg.mxu0
    %v189 = vpack.c.bf16 %v186, %v183
    %v191 = vsel %vm93, %v60, 0
    %193 = vmatprep.subr.bf16.mxu0 0
    %194 = vmatpush1.bf16.msra.mxu0 0
    %195 = vmatprep.subr.bf16.mxu0 0
    %196 = vmatpush1.bf16.msra.mxu0 0
    %197 = vmatprep.subr.bf16.mxu0 0
    %198 = vmatpush1.bf16.msra.mxu0 0
    %199 = vmatprep.subr.bf16.mxu0 0
    %200 = vmatpush1.bf16.msra.mxu0 0
    %201 = vmatprep.subr.bf16.mxu0 0
    %202 = vmatpush1.bf16.msra.mxu0 0
    %203 = vmatprep.subr.bf16.mxu0 0
    %204 = vmatpush1.bf16.msra.mxu0 0
    %205 = vmatprep.subr.bf16.mxu0 0
    %206 = vmatpush1.bf16.msra.mxu0 0
    %207 = vmatprep.subr.bf16.mxu0 0
    %208 = vmatpush1.bf16.msra.mxu0 %v189
    %209 = vmatprep.subr.bf16.mxu0 0
    %210 = vmatpush2.bf16.msra.mxu0 0
    %211 = vmatprep.subr.bf16.mxu0 0
    %212 = vmatpush2.bf16.msra.mxu0 0
    %213 = vmatprep.subr.bf16.mxu0 0
    %214 = vmatpush2.bf16.msra.mxu0 0
    %215 = vmatprep.subr.bf16.mxu0 0
    %216 = vmatpush2.bf16.msra.mxu0 0
    %217 = vmatprep.subr.bf16.mxu0 0
    %218 = vmatpush2.bf16.msra.mxu0 0
    %219 = vmatprep.subr.bf16.mxu0 0
    %220 = vmatpush2.bf16.msra.mxu0 0
    %221 = vmatprep.subr.bf16.mxu0 0
    %222 = vmatpush2.bf16.msra.mxu0 0
    %223 = vmatprep.subr.bf16.mxu0 0
    %224 = vmatpush2.bf16.msra.mxu0 0
    %225 = vmatprep.mubr.bf16.mxu0 0
    %226 = vmatmul.mubr.bf16.gmra.mxu0 %v191
    %v227 = vpop.f32.mrf.mxu0
    %v228 = vadd.f32 0.0, %v227
    %v229 = vpop.f32.mrf.mxu0
    %v230 = vpop.f32.mrf.mxu0
    %v231 = vadd.f32 0.0, %v230
    %v232 = vpop.f32.mrf.mxu0
    %233 = vdwg.mxu0
    %v235 = vsel %vm93, %v144, 0
    %237 = vmatprep.subr.bf16.mxu0 0
    %238 = vmatpush1.bf16.msra.mxu0 0
    %239 = vmatprep.subr.bf16.mxu0 0
    %240 = vmatpush1.bf16.msra.mxu0 0
    %241 = vmatprep.subr.bf16.mxu0 0
    %242 = vmatpush1.bf16.msra.mxu0 0
    %243 = vmatprep.subr.bf16.mxu0 0
    %244 = vmatpush1.bf16.msra.mxu0 0
    %245 = vmatprep.subr.bf16.mxu0 0
    %246 = vmatpush1.bf16.msra.mxu0 0
    %247 = vmatprep.subr.bf16.mxu0 0
    %248 = vmatpush1.bf16.msra.mxu0 0
    %249 = vmatprep.subr.bf16.mxu0 0
    %250 = vmatpush1.bf16.msra.mxu0 0
    %251 = vmatprep.subr.bf16.mxu0 0
    %252 = vmatpush1.bf16.msra.mxu0 %v60
    %253 = vmatprep.subr.bf16.mxu0 0
    %254 = vmatpush2.bf16.msra.mxu0 0
    %255 = vmatprep.subr.bf16.mxu0 0
    %256 = vmatpush2.bf16.msra.mxu0 0
    %257 = vmatprep.subr.bf16.mxu0 0
    %258 = vmatpush2.bf16.msra.mxu0 0
    %259 = vmatprep.subr.bf16.mxu0 0
    %260 = vmatpush2.bf16.msra.mxu0 0
    %261 = vmatprep.subr.bf16.mxu0 0
    %262 = vmatpush2.bf16.msra.mxu0 0
    %263 = vmatprep.subr.bf16.mxu0 0
    %264 = vmatpush2.bf16.msra.mxu0 0
    %265 = vmatprep.subr.bf16.mxu0 0
    %266 = vmatpush2.bf16.msra.mxu0 0
    %267 = vmatprep.subr.bf16.mxu0 0
    %268 = vmatpush2.bf16.msra.mxu0 0
    %269 = vmatprep.mubr.bf16.mxu0 0
    %270 = vmatmul.mubr.bf16.gmra.mxu0 %v235
    %v271 = vpop.f32.mrf.mxu0
    %v272 = vadd.f32 0.0, %v271
    %v273 = vpop.f32.mrf.mxu0
    %v274 = vpop.f32.mrf.mxu0
    %v275 = vadd.f32 0.0, %v274
    %v276 = vpop.f32.mrf.mxu0
    %277 = vdwg.mxu0
    %v278 = vpack.c.bf16 %v275, %v272
    %279 = vmatprep.subr.bf16.mxu0 0
    %280 = vmatpush1.bf16.msra.mxu0 0
    %281 = vmatprep.subr.bf16.mxu0 0
    %282 = vmatpush1.bf16.msra.mxu0 0
    %283 = vmatprep.subr.bf16.mxu0 0
    %284 = vmatpush1.bf16.msra.mxu0 0
    %285 = vmatprep.subr.bf16.mxu0 0
    %286 = vmatpush1.bf16.msra.mxu0 0
    %287 = vmatprep.subr.bf16.mxu0 0
    %288 = vmatpush1.bf16.msra.mxu0 0
    %289 = vmatprep.subr.bf16.mxu0 0
    %290 = vmatpush1.bf16.msra.mxu0 0
    %291 = vmatprep.subr.bf16.mxu0 0
    %292 = vmatpush1.bf16.msra.mxu0 0
    %293 = vmatprep.subr.bf16.mxu0 0
    %294 = vmatpush1.bf16.msra.mxu0 %v278
    %295 = vmatprep.subr.bf16.mxu0 0
    %296 = vmatpush2.bf16.msra.mxu0 0
    %297 = vmatprep.subr.bf16.mxu0 0
    %298 = vmatpush2.bf16.msra.mxu0 0
    %299 = vmatprep.subr.bf16.mxu0 0
    %300 = vmatpush2.bf16.msra.mxu0 0
    %301 = vmatprep.subr.bf16.mxu0 0
    %302 = vmatpush2.bf16.msra.mxu0 0
    %303 = vmatprep.subr.bf16.mxu0 0
    %304 = vmatpush2.bf16.msra.mxu0 0
    %305 = vmatprep.subr.bf16.mxu0 0
    %306 = vmatpush2.bf16.msra.mxu0 0
    %307 = vmatprep.subr.bf16.mxu0 0
    %308 = vmatpush2.bf16.msra.mxu0 0
    %309 = vmatprep.subr.bf16.mxu0 0
    %310 = vmatpush2.bf16.msra.mxu0 0
    %311 = vmatprep.mubr.bf16.mxu0 0
    %312 = vmatmul.mubr.bf16.gmra.mxu0 %v191
    %v313 = vpop.f32.mrf.mxu0
    %v314 = vadd.f32 0.0, %v313
    %v315 = vpop.f32.mrf.mxu0
    %v316 = vpop.f32.mrf.mxu0
    %v317 = vadd.f32 0.0, %v316
    %v318 = vpop.f32.mrf.mxu0
    %319 = vdwg.mxu0
    %vm320 = vcmp.gt.f32.partialorder %v228, 0.5
    %vm321 = vcmp.gt.f32.partialorder %v231, 0.5
    %vm322 = vcmp.gt.f32.partialorder %v314, 0.5
    %vm323 = vcmp.gt.f32.partialorder %v317, 0.5
    %v324 = vsub.f32 %v85, 0.5
    %v325 = vsub.f32 %v86, 0.5
    %vm326 = vcmp.gt.f32.partialorder %v228, %v324
    %vm327 = vcmp.gt.f32.partialorder %v231, %v325
    %vm328 = vcmp.gt.f32.partialorder %v314, %v324
    %vm329 = vcmp.gt.f32.partialorder %v317, %v325
    %vm330 = vcmp.eq.f32.partialorder %v123, 1.0
    %vm331 = vcmp.eq.f32.partialorder %v128, 1.0
    %vm332 = vcmp.eq.f32.partialorder %v123, 2.0
    %vm333 = vcmp.eq.f32.partialorder %v128, 2.0
    %vm334 = vmxor %vm320, 1
    %vm335 = vmxor %vm321, 1
    %vm336 = vmand %vm334, %vm330
    %vm337 = vmand %vm335, %vm331
    %v338 = vsel %vm336, 1, 0
    %v339 = vsel %vm337, 1, 0
    %v340 = vcvt.s32.f32 %v338
    %v341 = vcvt.s32.f32 %v339
    %v342 = vsel %vm93, %v340, 0.0
    %v343 = vsel %vm93, %v341, 0.0
    %v344 = vadd.f32 %v342, %v343
    %345 = vadd.xlane.f32.xlu0 %v344
    %v346 = vpop.xlane.xlu0 %345
    %v347 = vrot.slane %v346, 4
    %v348 = vadd.f32 %v346, %v347
    %v349 = vrot.slane %v348, 2
    %v350 = vadd.f32 %v348, %v349
    %v351 = vrot.slane %v350, 1
    %v352 = vadd.f32 %v350, %v351
    %s353 = vtos %v352
    %v354 = vstv %s353
    %vm355 = vmxor %vm322, 1
    %vm356 = vmxor %vm323, 1
    %vm357 = vmand %vm355, %vm332
    %vm358 = vmand %vm356, %vm333
    %v359 = vsel %vm357, 1, 0
    %v360 = vsel %vm358, 1, 0
    %v361 = vcvt.s32.f32 %v359
    %v362 = vcvt.s32.f32 %v360
    %v363 = vsel %vm93, %v361, 0.0
    %v364 = vsel %vm93, %v362, 0.0
    %v365 = vadd.f32 %v363, %v364
    %366 = vadd.xlane.f32.xlu0 %v365
    %v367 = vpop.xlane.xlu0 %366
    %v368 = vrot.slane %v367, 4
    %v369 = vadd.f32 %v367, %v368
    %v370 = vrot.slane %v369, 2
    %v371 = vadd.f32 %v369, %v370
    %v372 = vrot.slane %v371, 1
    %v373 = vadd.f32 %v371, %v372
    %s374 = vtos %v373
    %v375 = vstv %s374
    %v376 = vadd.f32 %v354, %v375
    %vm377 = vmxor %vm330, 1
    %vm378 = vmxor %vm331, 1
    %vm379 = vmand %vm326, %vm377
    %vm380 = vmand %vm327, %vm378
    %v381 = vsel %vm379, 1, 0
    %v382 = vsel %vm380, 1, 0
    %v383 = vcvt.s32.f32 %v381
    %v384 = vcvt.s32.f32 %v382
    %v385 = vsel %vm93, %v383, 0.0
    %v386 = vsel %vm93, %v384, 0.0
    %v387 = vadd.f32 %v385, %v386
    %388 = vadd.xlane.f32.xlu0 %v387
    %v389 = vpop.xlane.xlu0 %388
    %v390 = vrot.slane %v389, 4
    %v391 = vadd.f32 %v389, %v390
    %v392 = vrot.slane %v391, 2
    %v393 = vadd.f32 %v391, %v392
    %v394 = vrot.slane %v393, 1
    %v395 = vadd.f32 %v393, %v394
    %s396 = vtos %v395
    %v397 = vstv %s396
    %vm398 = vmxor %vm332, 1
    %vm399 = vmxor %vm333, 1
    %vm400 = vmand %vm328, %vm398
    %vm401 = vmand %vm329, %vm399
    %v402 = vsel %vm400, 1, 0
    %v403 = vsel %vm401, 1, 0
    %v404 = vcvt.s32.f32 %v402
    %v405 = vcvt.s32.f32 %v403
    %v406 = vsel %vm93, %v404, 0.0
    %v407 = vsel %vm93, %v405, 0.0
    %v408 = vadd.f32 %v406, %v407
    %409 = vadd.xlane.f32.xlu0 %v408
    %v410 = vpop.xlane.xlu0 %409
    %v411 = vrot.slane %v410, 4
    %v412 = vadd.f32 %v410, %v411
    %v413 = vrot.slane %v412, 2
    %v414 = vadd.f32 %v412, %v413
    %v415 = vrot.slane %v414, 1
    %v416 = vadd.f32 %v414, %v415
    %s417 = vtos %v416
    %v418 = vstv %s417
    %v419 = vadd.f32 %v397, %v418
    %v420 = vsel %vm330, 1, 0
    %v421 = vsel %vm331, 1, 0
    %v422 = vcvt.s32.f32 %v420
    %v423 = vcvt.s32.f32 %v421
    %v424 = vsel %vm93, %v422, 0.0
    %v425 = vsel %vm93, %v423, 0.0
    %v426 = vadd.f32 %v424, %v425
    %427 = vadd.xlane.f32.xlu0 %v426
    %v428 = vpop.xlane.xlu0 %427
    %v429 = vrot.slane %v428, 4
    %v430 = vadd.f32 %v428, %v429
    %v431 = vrot.slane %v430, 2
    %v432 = vadd.f32 %v430, %v431
    %v433 = vrot.slane %v432, 1
    %v434 = vadd.f32 %v432, %v433
    %s435 = vtos %v434
    %v436 = vstv %s435
    %v437 = vsel %vm332, 1, 0
    %v438 = vsel %vm333, 1, 0
    %v439 = vcvt.s32.f32 %v437
    %v440 = vcvt.s32.f32 %v438
    %v441 = vsel %vm93, %v439, 0.0
    %v442 = vsel %vm93, %v440, 0.0
    %v443 = vadd.f32 %v441, %v442
    %444 = vadd.xlane.f32.xlu0 %v443
    %v445 = vpop.xlane.xlu0 %444
    %v446 = vrot.slane %v445, 4
    %v447 = vadd.f32 %v445, %v446
    %v448 = vrot.slane %v447, 2
    %v449 = vadd.f32 %v447, %v448
    %v450 = vrot.slane %v449, 1
    %v451 = vadd.f32 %v449, %v450
    %s452 = vtos %v451
    %v453 = vstv %s452
    %v454 = vadd.f32 %v436, %v453
    %v455 = vsub.f32 %v454, %v376
    %v456 = vadd.f32 %v376, %v419
    %v457 = vadd.f32 %v456, %v455
    %v458 = vsub.f32 256.0, %v457
    %v459 = vadd.f32 %v455, %v419
    %v460 = vrcp.pop %v459
    %v461 = vmul.f32 %v455, %v460
    %v462 = vadd.f32 %v458, %v376
    %v463 = vrcp.pop %v462
    %v464 = vmul.f32 %v458, %v463
    %v465 = vadd.f32 %v461, %v464
    %v466 = vmul.f32 %v465, 0.5
    %v467 = vadd.f32 %v466, 0.0
    %s468 = scalar_lea.vmem [#allocation2], 48
    %v469 = vld [vmem:[%s468] sm:$0xff]
    %v470 = vld [vmem:[%s468 + $0x8] sm:$0xff]
    %v471 = vld [vmem:[%s468 + $0x10] sm:$0xff]
    %v472 = vld [vmem:[%s468 + $0x18] sm:$0xff]
    %v473 = vld [vmem:[%s468 + $0x20] sm:$0xff]
    %v474 = vld [vmem:[%s468 + $0x28] sm:$0xff]
    %v475 = vsel %vm93, %v469, -inf
    %v476 = vsel %vm93, %v471, -inf
    %v477 = vsel %vm93, %v473, -inf
    %v478 = vmax.f32 %v475, %v477
    %v479 = vmax.f32 %v478, %v476
    %v480 = vsel %vm93, %v470, -inf
    %v481 = vsel %vm93, %v472, -inf
    %v482 = vsel %vm93, %v474, -inf
    %v483 = vmax.f32 %v480, %v482
    %v484 = vmax.f32 %v483, %v481
    %vm485 = vcmp.eq.f32.partialorder %v469, %v479
    %vm486 = vcmp.eq.f32.partialorder %v470, %v484
    %vm487 = vcmp.eq.f32.partialorder %v471, %v479
    %vm488 = vcmp.eq.f32.partialorder %v472, %v484
    %vm489 = vcmp.eq.f32.partialorder %v473, %v479
    %vm490 = vcmp.eq.f32.partialorder %v474, %v484
    %v491 = vsel %vm485, %v104, 3.0
    %v492 = vsel %vm486, %v104, 3.0
    %v493 = vsel %vm487, %v105, 3.0
    %v494 = vsel %vm488, %v105, 3.0
    %v495 = vsel %vm489, %v106, 3.0
    %v496 = vsel %vm490, %v106, 3.0
    %v497 = vsel %vm93, %v491, inf
    %v498 = vsel %vm93, %v493, inf
    %v499 = vsel %vm93, %v495, inf
    %v500 = vmin.f32 %v497, %v499
    %v501 = vmin.f32 %v500, %v498
    %v502 = vsel %vm93, %v492, inf
    %v503 = vsel %vm93, %v494, inf
    %v504 = vsel %vm93, %v496, inf
    %v505 = vmin.f32 %v502, %v504
    %v506 = vmin.f32 %v505, %v503
    %s507 = scalar_lea.vmem [#allocation5], 16
    %v508 = vld [vmem:[%s507] sm:$0xff]
    %v509 = vld [vmem:[%s507 + $0x8] sm:$0xff]
    %vm510 = vcmp.eq.s32.totalorder %v508, 1
    %vm511 = vcmp.eq.s32.totalorder %v509, 1
    %v512 = vsel %vm510, 1, 0
    %v513 = vsel %vm511, 1, 0
    %v514 = vcvt.s32.f32 %v512
    %v515 = vcvt.s32.f32 %v513
    %v516 = vpack.c.bf16 %v515, %v514
    %vm517 = vcmp.eq.s32.totalorder %v508, 2
    %vm518 = vcmp.eq.s32.totalorder %v509, 2
    %v519 = vsel %vm517, 1, 0
    %v520 = vsel %vm518, 1, 0
    %v521 = vcvt.s32.f32 %v519
    %v522 = vcvt.s32.f32 %v520
    %v523 = vpack.c.bf16 %v522, %v521
    %v525 = vsel %vm93, %v516, 0
    %527 = vmatprep.subr.bf16.mxu0 0
    %528 = vmatpush1.bf16.msra.mxu0 0
    %529 = vmatprep.subr.bf16.mxu0 0
    %530 = vmatpush1.bf16.msra.mxu0 0
    %531 = vmatprep.subr.bf16.mxu0 0
    %532 = vmatpush1.bf16.msra.mxu0 0
    %533 = vmatprep.subr.bf16.mxu0 0
    %534 = vmatpush1.bf16.msra.mxu0 0
    %535 = vmatprep.subr.bf16.mxu0 0
    %536 = vmatpush1.bf16.msra.mxu0 0
    %537 = vmatprep.subr.bf16.mxu0 0
    %538 = vmatpush1.bf16.msra.mxu0 0
    %539 = vmatprep.subr.bf16.mxu0 0
    %540 = vmatpush1.bf16.msra.mxu0 0
    %541 = vmatprep.subr.bf16.mxu0 0
    %542 = vmatpush1.bf16.msra.mxu0 %v60
    %543 = vmatprep.subr.bf16.mxu0 0
    %544 = vmatpush2.bf16.msra.mxu0 0
    %545 = vmatprep.subr.bf16.mxu0 0
    %546 = vmatpush2.bf16.msra.mxu0 0
    %547 = vmatprep.subr.bf16.mxu0 0
    %548 = vmatpush2.bf16.msra.mxu0 0
    %549 = vmatprep.subr.bf16.mxu0 0
    %550 = vmatpush2.bf16.msra.mxu0 0
    %551 = vmatprep.subr.bf16.mxu0 0
    %552 = vmatpush2.bf16.msra.mxu0 0
    %553 = vmatprep.subr.bf16.mxu0 0
    %554 = vmatpush2.bf16.msra.mxu0 0
    %555 = vmatprep.subr.bf16.mxu0 0
    %556 = vmatpush2.bf16.msra.mxu0 0
    %557 = vmatprep.subr.bf16.mxu0 0
    %558 = vmatpush2.bf16.msra.mxu0 0
    %559 = vmatprep.mubr.bf16.mxu0 0
    %560 = vmatmul.mubr.bf16.gmra.mxu0 %v525
    %v561 = vpop.f32.mrf.mxu0
    %v562 = vadd.f32 0.0, %v561
    %v563 = vpop.f32.mrf.mxu0
    %v564 = vpop.f32.mrf.mxu0
    %v565 = vadd.f32 0.0, %v564
    %v566 = vpop.f32.mrf.mxu0
    %567 = vdwg.mxu0
    %v568 = vpack.c.bf16 %v565, %v562
    %569 = vmatprep.subr.bf16.mxu0 0
    %570 = vmatpush1.bf16.msra.mxu0 0
    %571 = vmatprep.subr.bf16.mxu0 0
    %572 = vmatpush1.bf16.msra.mxu0 0
    %573 = vmatprep.subr.bf16.mxu0 0
    %574 = vmatpush1.bf16.msra.mxu0 0
    %575 = vmatprep.subr.bf16.mxu0 0
    %576 = vmatpush1.bf16.msra.mxu0 0
    %577 = vmatprep.subr.bf16.mxu0 0
    %578 = vmatpush1.bf16.msra.mxu0 0
    %579 = vmatprep.subr.bf16.mxu0 0
    %580 = vmatpush1.bf16.msra.mxu0 0
    %581 = vmatprep.subr.bf16.mxu0 0
    %582 = vmatpush1.bf16.msra.mxu0 0
    %583 = vmatprep.subr.bf16.mxu0 0
    %584 = vmatpush1.bf16.msra.mxu0 %v568
    %585 = vmatprep.subr.bf16.mxu0 0
    %586 = vmatpush2.bf16.msra.mxu0 0
    %587 = vmatprep.subr.bf16.mxu0 0
    %588 = vmatpush2.bf16.msra.mxu0 0
    %589 = vmatprep.subr.bf16.mxu0 0
    %590 = vmatpush2.bf16.msra.mxu0 0
    %591 = vmatprep.subr.bf16.mxu0 0
    %592 = vmatpush2.bf16.msra.mxu0 0
    %593 = vmatprep.subr.bf16.mxu0 0
    %594 = vmatpush2.bf16.msra.mxu0 0
    %595 = vmatprep.subr.bf16.mxu0 0
    %596 = vmatpush2.bf16.msra.mxu0 0
    %597 = vmatprep.subr.bf16.mxu0 0
    %598 = vmatpush2.bf16.msra.mxu0 0
    %599 = vmatprep.subr.bf16.mxu0 0
    %600 = vmatpush2.bf16.msra.mxu0 0
    %601 = vmatprep.mubr.bf16.mxu0 0
    %602 = vmatmul.mubr.bf16.gmra.mxu0 %v191
    %v603 = vpop.f32.mrf.mxu0
    %v604 = vadd.f32 0.0, %v603
    %v605 = vpop.f32.mrf.mxu0
    %v606 = vpop.f32.mrf.mxu0
    %v607 = vadd.f32 0.0, %v606
    %v608 = vpop.f32.mrf.mxu0
    %609 = vdwg.mxu0
    %v611 = vsel %vm93, %v523, 0
    %613 = vmatprep.subr.bf16.mxu0 0
    %614 = vmatpush1.bf16.msra.mxu0 0
    %615 = vmatprep.subr.bf16.mxu0 0
    %616 = vmatpush1.bf16.msra.mxu0 0
    %617 = vmatprep.subr.bf16.mxu0 0
    %618 = vmatpush1.bf16.msra.mxu0 0
    %619 = vmatprep.subr.bf16.mxu0 0
    %620 = vmatpush1.bf16.msra.mxu0 0
    %621 = vmatprep.subr.bf16.mxu0 0
    %622 = vmatpush1.bf16.msra.mxu0 0
    %623 = vmatprep.subr.bf16.mxu0 0
    %624 = vmatpush1.bf16.msra.mxu0 0
    %625 = vmatprep.subr.bf16.mxu0 0
    %626 = vmatpush1.bf16.msra.mxu0 0
    %627 = vmatprep.subr.bf16.mxu0 0
    %628 = vmatpush1.bf16.msra.mxu0 %v60
    %629 = vmatprep.subr.bf16.mxu0 0
    %630 = vmatpush2.bf16.msra.mxu0 0
    %631 = vmatprep.subr.bf16.mxu0 0
    %632 = vmatpush2.bf16.msra.mxu0 0
    %633 = vmatprep.subr.bf16.mxu0 0
    %634 = vmatpush2.bf16.msra.mxu0 0
    %635 = vmatprep.subr.bf16.mxu0 0
    %636 = vmatpush2.bf16.msra.mxu0 0
    %637 = vmatprep.subr.bf16.mxu0 0
    %638 = vmatpush2.bf16.msra.mxu0 0
    %639 = vmatprep.subr.bf16.mxu0 0
    %640 = vmatpush2.bf16.msra.mxu0 0
    %641 = vmatprep.subr.bf16.mxu0 0
    %642 = vmatpush2.bf16.msra.mxu0 0
    %643 = vmatprep.subr.bf16.mxu0 0
    %644 = vmatpush2.bf16.msra.mxu0 0
    %645 = vmatprep.mubr.bf16.mxu0 0
    %646 = vmatmul.mubr.bf16.gmra.mxu0 %v611
    %v647 = vpop.f32.mrf.mxu0
    %v648 = vadd.f32 0.0, %v647
    %v649 = vpop.f32.mrf.mxu0
    %v650 = vpop.f32.mrf.mxu0
    %v651 = vadd.f32 0.0, %v650
    %v652 = vpop.f32.mrf.mxu0
    %653 = vdwg.mxu0
    %v654 = vpack.c.bf16 %v651, %v648
    %655 = vmatprep.subr.bf16.mxu0 0
    %656 = vmatpush1.bf16.msra.mxu0 0
    %657 = vmatprep.subr.bf16.mxu0 0
    %658 = vmatpush1.bf16.msra.mxu0 0
    %659 = vmatprep.subr.bf16.mxu0 0
    %660 = vmatpush1.bf16.msra.mxu0 0
    %661 = vmatprep.subr.bf16.mxu0 0
    %662 = vmatpush1.bf16.msra.mxu0 0
    %663 = vmatprep.subr.bf16.mxu0 0
    %664 = vmatpush1.bf16.msra.mxu0 0
    %665 = vmatprep.subr.bf16.mxu0 0
    %666 = vmatpush1.bf16.msra.mxu0 0
    %667 = vmatprep.subr.bf16.mxu0 0
    %668 = vmatpush1.bf16.msra.mxu0 0
    %669 = vmatprep.subr.bf16.mxu0 0
    %670 = vmatpush1.bf16.msra.mxu0 %v654
    %671 = vmatprep.subr.bf16.mxu0 0
    %672 = vmatpush2.bf16.msra.mxu0 0
    %673 = vmatprep.subr.bf16.mxu0 0
    %674 = vmatpush2.bf16.msra.mxu0 0
    %675 = vmatprep.subr.bf16.mxu0 0
    %676 = vmatpush2.bf16.msra.mxu0 0
    %677 = vmatprep.subr.bf16.mxu0 0
    %678 = vmatpush2.bf16.msra.mxu0 0
    %679 = vmatprep.subr.bf16.mxu0 0
    %680 = vmatpush2.bf16.msra.mxu0 0
    %681 = vmatprep.subr.bf16.mxu0 0
    %682 = vmatpush2.bf16.msra.mxu0 0
    %683 = vmatprep.subr.bf16.mxu0 0
    %684 = vmatpush2.bf16.msra.mxu0 0
    %685 = vmatprep.subr.bf16.mxu0 0
    %686 = vmatpush2.bf16.msra.mxu0 0
    %687 = vmatprep.mubr.bf16.mxu0 0
    %688 = vmatmul.mubr.bf16.gmra.mxu0 %v191
    %v689 = vpop.f32.mrf.mxu0
    %v690 = vadd.f32 0.0, %v689
    %v691 = vpop.f32.mrf.mxu0
    %v692 = vpop.f32.mrf.mxu0
    %v693 = vadd.f32 0.0, %v692
    %v694 = vpop.f32.mrf.mxu0
    %695 = vdwg.mxu0
    %vm696 = vcmp.gt.f32.partialorder %v604, 0.5
    %vm697 = vcmp.gt.f32.partialorder %v607, 0.5
    %vm698 = vcmp.gt.f32.partialorder %v690, 0.5
    %vm699 = vcmp.gt.f32.partialorder %v693, 0.5
    %vm700 = vcmp.gt.f32.partialorder %v604, %v324
    %vm701 = vcmp.gt.f32.partialorder %v607, %v325
    %vm702 = vcmp.gt.f32.partialorder %v690, %v324
    %vm703 = vcmp.gt.f32.partialorder %v693, %v325
    %vm704 = vcmp.eq.f32.partialorder %v501, 1.0
    %vm705 = vcmp.eq.f32.partialorder %v506, 1.0
    %vm706 = vcmp.eq.f32.partialorder %v501, 2.0
    %vm707 = vcmp.eq.f32.partialorder %v506, 2.0
    %vm708 = vmxor %vm696, 1
    %vm709 = vmxor %vm697, 1
    %vm710 = vmand %vm708, %vm704
    %vm711 = vmand %vm709, %vm705
    %v712 = vsel %vm710, 1, 0
    %v713 = vsel %vm711, 1, 0
    %v714 = vcvt.s32.f32 %v712
    %v715 = vcvt.s32.f32 %v713
    %v716 = vsel %vm93, %v714, 0.0
    %v717 = vsel %vm93, %v715, 0.0
    %v718 = vadd.f32 %v716, %v717
    %719 = vadd.xlane.f32.xlu0 %v718
    %v720 = vpop.xlane.xlu0 %719
    %v721 = vrot.slane %v720, 4
    %v722 = vadd.f32 %v720, %v721
    %v723 = vrot.slane %v722, 2
    %v724 = vadd.f32 %v722, %v723
    %v725 = vrot.slane %v724, 1
    %v726 = vadd.f32 %v724, %v725
    %s727 = vtos %v726
    %v728 = vstv %s727
    %vm729 = vmxor %vm698, 1
    %vm730 = vmxor %vm699, 1
    %vm731 = vmand %vm729, %vm706
    %vm732 = vmand %vm730, %vm707
    %v733 = vsel %vm731, 1, 0
    %v734 = vsel %vm732, 1, 0
    %v735 = vcvt.s32.f32 %v733
    %v736 = vcvt.s32.f32 %v734
    %v737 = vsel %vm93, %v735, 0.0
    %v738 = vsel %vm93, %v736, 0.0
    %v739 = vadd.f32 %v737, %v738
    %740 = vadd.xlane.f32.xlu0 %v739
    %v741 = vpop.xlane.xlu0 %740
    %v742 = vrot.slane %v741, 4
    %v743 = vadd.f32 %v741, %v742
    %v744 = vrot.slane %v743, 2
    %v745 = vadd.f32 %v743, %v744
    %v746 = vrot.slane %v745, 1
    %v747 = vadd.f32 %v745, %v746
    %s748 = vtos %v747
    %v749 = vstv %s748
    %v750 = vadd.f32 %v728, %v749
    %vm751 = vmxor %vm704, 1
    %vm752 = vmxor %vm705, 1
    %vm753 = vmand %vm700, %vm751
    %vm754 = vmand %vm701, %vm752
    %v755 = vsel %vm753, 1, 0
    %v756 = vsel %vm754, 1, 0
    %v757 = vcvt.s32.f32 %v755
    %v758 = vcvt.s32.f32 %v756
    %v759 = vsel %vm93, %v757, 0.0
    %v760 = vsel %vm93, %v758, 0.0
    %v761 = vadd.f32 %v759, %v760
    %762 = vadd.xlane.f32.xlu0 %v761
    %v763 = vpop.xlane.xlu0 %762
    %v764 = vrot.slane %v763, 4
    %v765 = vadd.f32 %v763, %v764
    %v766 = vrot.slane %v765, 2
    %v767 = vadd.f32 %v765, %v766
    %v768 = vrot.slane %v767, 1
    %v769 = vadd.f32 %v767, %v768
    %s770 = vtos %v769
    %v771 = vstv %s770
    %vm772 = vmxor %vm706, 1
    %vm773 = vmxor %vm707, 1
    %vm774 = vmand %vm702, %vm772
    %vm775 = vmand %vm703, %vm773
    %v776 = vsel %vm774, 1, 0
    %v777 = vsel %vm775, 1, 0
    %v778 = vcvt.s32.f32 %v776
    %v779 = vcvt.s32.f32 %v777
    %v780 = vsel %vm93, %v778, 0.0
    %v781 = vsel %vm93, %v779, 0.0
    %v782 = vadd.f32 %v780, %v781
    %783 = vadd.xlane.f32.xlu0 %v782
    %v784 = vpop.xlane.xlu0 %783
    %v785 = vrot.slane %v784, 4
    %v786 = vadd.f32 %v784, %v785
    %v787 = vrot.slane %v786, 2
    %v788 = vadd.f32 %v786, %v787
    %v789 = vrot.slane %v788, 1
    %v790 = vadd.f32 %v788, %v789
    %s791 = vtos %v790
    %v792 = vstv %s791
    %v793 = vadd.f32 %v771, %v792
    %v794 = vsel %vm704, 1, 0
    %v795 = vsel %vm705, 1, 0
    %v796 = vcvt.s32.f32 %v794
    %v797 = vcvt.s32.f32 %v795
    %v798 = vsel %vm93, %v796, 0.0
    %v799 = vsel %vm93, %v797, 0.0
    %v800 = vadd.f32 %v798, %v799
    %801 = vadd.xlane.f32.xlu0 %v800
    %v802 = vpop.xlane.xlu0 %801
    %v803 = vrot.slane %v802, 4
    %v804 = vadd.f32 %v802, %v803
    %v805 = vrot.slane %v804, 2
    %v806 = vadd.f32 %v804, %v805
    %v807 = vrot.slane %v806, 1
    %v808 = vadd.f32 %v806, %v807
    %s809 = vtos %v808
    %v810 = vstv %s809
    %v811 = vsel %vm706, 1, 0
    %v812 = vsel %vm707, 1, 0
    %v813 = vcvt.s32.f32 %v811
    %v814 = vcvt.s32.f32 %v812
    %v815 = vsel %vm93, %v813, 0.0
    %v816 = vsel %vm93, %v814, 0.0
    %v817 = vadd.f32 %v815, %v816
    %818 = vadd.xlane.f32.xlu0 %v817
    %v819 = vpop.xlane.xlu0 %818
    %v820 = vrot.slane %v819, 4
    %v821 = vadd.f32 %v819, %v820
    %v822 = vrot.slane %v821, 2
    %v823 = vadd.f32 %v821, %v822
    %v824 = vrot.slane %v823, 1
    %v825 = vadd.f32 %v823, %v824
    %s826 = vtos %v825
    %v827 = vstv %s826
    %v828 = vadd.f32 %v810, %v827
    %v829 = vsub.f32 %v828, %v750
    %v830 = vadd.f32 %v750, %v793
    %v831 = vadd.f32 %v830, %v829
    %v832 = vsub.f32 256.0, %v831
    %v833 = vadd.f32 %v829, %v793
    %v834 = vrcp.pop %v833
    %v835 = vmul.f32 %v829, %v834
    %v836 = vadd.f32 %v832, %v750
    %v837 = vrcp.pop %v836
    %v838 = vmul.f32 %v832, %v837
    %v839 = vadd.f32 %v835, %v838
    %v840 = vmul.f32 %v839, 0.5
    %v841 = vadd.f32 %v467, %v840
    %vm842 = vcmask 0
    %843 = vst.msk [vmem:[#allocation7] sm:$0x1] %vm842, %v841
    // Predicated region
    $region18: #{mask_mean_metric.1} parent=1 // pred_check
      _
    $region19: #{mask_mean_metric.1} parent=1 // pred_check_branch
      %845 = sbr.rel (0) target = $region21
    $region20: #{mask_mean_metric.1} parent=1 // pred_region
      %s847 = ssub.s32 16, 16
      %848 = vsyncadd [#allocation4], %s847
      %s850 = sshll.u32 [#allocation7], 4
      %s851 = int_to_ptr.vmem [resolvable:$true] %s850
      %853 = dma.vmem_to_hbm [thread:$0]  %s851, 16, %s2, [#allocation4]
    $region21: #{mask_mean_metric.1} parent=1 // pred_fallthru
      _
    // Predicated region
    $region22: #{mask_mean_metric.1} parent=1 // pred_check
      _
    $region23: #{mask_mean_metric.1} parent=1 // pred_check_branch
      %855 = sbr.rel (0) target = $region25
    $region24: #{mask_mean_metric.1} parent=1 // pred_region
      %856 = dma.done [#allocation4], 16
    $region25: #{mask_mean_metric.1} parent=1 // pred_fallthru
      _
    %857 = vsyncpa [#allocation3], 1
    %858 = vsyncpa [#allocation6], 1
    %859 = vsyncpa [#allocation4], 1

</llo_original>
